<compile_context>
chip_gen: v7x
topology: tpu7x:2x2x1
jax: 0.10.0
libtpu: 0.0.40
codegen_flags: <defaults>
</compile_context>

<pallas_src>
import jax
import jax.numpy as jnp
from jax.experimental import pallas as pl
from jax.experimental.pallas import tpu as pltpu


def theta_kernel(x_ref, w_ref, b_ref, o_ref):
    x = x_ref[...]                      # (TB, D) f32 feature tile (streamed)
    w = w_ref[...]                      # (D, 1)  f32 weight column (resident)
    b = b_ref[0]                        # scalar bias from SMEM
    # Degenerate N=1 MXU matmul: ~8 cycles per 128-row block, trivially hidden
    # under the feature DMA; keeps XLU/VPU off the critical path.
    r = jnp.dot(x, w, preferred_element_type=jnp.float32) + b
    o_ref[...] = r.astype(o_ref.dtype)


def theta_forward(feature, weight, bias, *, tile_bytes=8 << 20):
    """feature: [B, D] f32, weight: [1, D] f32, bias: [1] f32 -> [B, 1] f32.

    tile_bytes: target byte size of one feature tile in VMEM (double-buffered
    by the BlockSpec pipeline, so peak feature footprint ~= 2 * tile_bytes).
    """
    B, D = feature.shape
    assert weight.shape == (1, D)
    assert bias.shape == (1,)

    itemsize = jnp.dtype(feature.dtype).itemsize

    # --- Byte-budget-driven batch tile, sublane-aligned, clamped to B. ------
    tb = max(8, tile_bytes // (D * itemsize))
    if tb >= B:
        TB = B                          # single full-extent block
    else:
        TB = max(8, (tb // 8) * 8)      # round DOWN to a multiple of 8
    grid = (pl.cdiv(B, TB),)

    # --- Scoped-VMEM limit sized to the real footprint (with headroom). -----
    # 2x feature tile (double buffer) + 2x output tile + weight column + slack.
    vmem_needed = 2 * TB * D * itemsize + 2 * TB * itemsize + D * itemsize
    vmem_limit = int(min(max(int(vmem_needed * 1.5) + (1 << 20), 16 << 20),
                         48 << 20))     # stays under v7x's 64 MiB physical VMEM

    # Weight pre-transposed to a lane-trivial (D, 1) column for the MXU dot.
    w_col = weight.reshape(D, 1)

    cost = pl.CostEstimate(
        flops=2 * B * D,
        bytes_accessed=B * D * itemsize + D * itemsize + B * itemsize,
        transcendentals=0,
    )

    return pl.pallas_call(
        theta_kernel,
        out_shape=jax.ShapeDtypeStruct((B, 1), jnp.float32),
        grid=grid,
        in_specs=[
            pl.BlockSpec((TB, D), lambda i: (i, 0)),   # feature tile  -> VMEM
            pl.BlockSpec((D, 1), lambda i: (0, 0)),    # weight column -> VMEM
            pl.BlockSpec(memory_space=pltpu.SMEM),     # bias scalar   -> SMEM
        ],
        out_specs=pl.BlockSpec((TB, 1), lambda i: (i, 0)),
        compiler_params=pltpu.CompilerParams(
            dimension_semantics=("parallel",),         # shard batch across TCs
            vmem_limit_bytes=vmem_limit,
        ),
        cost_estimate=cost,
    )(feature, w_col, bias)


if __name__ == "__main__":
    # Small shapes consistent with the module; tile_bytes shrunk so the grid
    # has >1 step and the tiling / index maps are actually exercised.
    B, D = 256, 128
    key = jax.random.PRNGKey(0)
    kx, kw, kb = jax.random.split(key, 3)

    feature = jax.random.normal(kx, (B, D), dtype=jnp.float32)
    # Deterministic "nn.Linear"-style init (uniform in +-1/sqrt(D)).
    bound = 1.0 / (D ** 0.5)
    weight = jax.random.uniform(kw, (1, D), minval=-bound, maxval=bound,
                                dtype=jnp.float32)
    bias = jax.random.uniform(kb, (1,), minval=-bound, maxval=bound,
                              dtype=jnp.float32)

    # 64 rows/tile -> grid of 4 steps at this small test size.
    r = theta_forward(feature, weight, bias, tile_bytes=64 * D * 4)
    r = jax.block_until_ready(r)

    # Correctness check against plain JAX reference.
    r_ref = feature @ weight.T + bias
    assert r.shape == (B, 1)
    assert jnp.allclose(r, r_ref, atol=1e-5, rtol=1e-5)

    # Also exercise the default (large-tile, single-block) path once.
    r2 = jax.block_until_ready(theta_forward(feature, weight, bias))
    assert jnp.allclose(r2, r_ref, atol=1e-5, rtol=1e-5)

    print("KERNEL_OK")
</pallas_src>

<mosaic_0001>
module attributes {stable_mosaic.version = 11 : i64} {
  func.func @theta_kernel(%arg0: i32, %arg1: memref<64x128xf32, #tpu.memory_space<vmem>>, %arg2: memref<128x1xf32, #tpu.memory_space<vmem>>, %arg3: memref<1xf32, #tpu.memory_space<smem>>, %arg4: memref<64x1xf32, #tpu.memory_space<vmem>>) attributes {dimension_semantics = [#tpu.dimension_semantics<parallel>], iteration_bounds = array<i64: 4>, scalar_prefetch = 0 : i64, scratch_operands = 0 : i64, tpu.core_type = #tpu.core_type<tc>, window_params = [{transform_indices = @transform_0, window_bounds = array<i64: 64, 128>}, {pipeline_mode = #tpu.pipeline_mode<synchronous>, transform_indices = @transform_1, window_bounds = array<i64: 128, 1>}, {transform_indices = @transform_2, window_bounds = array<i64: 1>}, {transform_indices = @transform_3, window_bounds = array<i64: 64, 1>}]} {
    %c0 = arith.constant 0 : index
    %c0_0 = arith.constant 0 : index
    %0 = vector.load %arg1[%c0, %c0_0] : memref<64x128xf32, #tpu.memory_space<vmem>>, vector<64x128xf32>
    %c0_1 = arith.constant 0 : index
    %c0_2 = arith.constant 0 : index
    %1 = vector.load %arg2[%c0_1, %c0_2] : memref<128x1xf32, #tpu.memory_space<vmem>>, vector<128x1xf32>
    %c0_3 = arith.constant 0 : index
    %2 = memref.load %arg3[%c0_3] : memref<1xf32, #tpu.memory_space<smem>>
    %cst = arith.constant dense<0.000000e+00> : vector<64x1xf32>
    %3 = tpu.matmul %0, %1, %cst {dimension_numbers = #tpu.dot_dimension_numbers<[1], [0], [0], [1], [0, 0, 1, 1], [], []>} : vector<64x128xf32>, vector<128x1xf32>, vector<64x1xf32> -> vector<64x1xf32>
    %4 = vector.broadcast %2 : f32 to vector<64x1xf32>
    %5 = arith.addf %3, %4 : vector<64x1xf32>
    %c0_4 = arith.constant 0 : index
    %c0_5 = arith.constant 0 : index
    %6 = vector.load %arg4[%c0_4, %c0_5] : memref<64x1xf32, #tpu.memory_space<vmem>>, vector<64x1xf32>
    tpu.vector_store %arg4[%c0_4, %c0_5], %5 {strides = array<i32>} : memref<64x1xf32, #tpu.memory_space<vmem>>, vector<64x1xf32>,
    return
  }
  func.func @transform_0(%arg0: i32) -> (i32, i32) {
    %c0_i32 = arith.constant 0 : i32
    %c0_i32_0 = arith.constant 0 : i32
    return %arg0, %c0_i32 : i32, i32
  }
  func.func @transform_1(%arg0: i32) -> (i32, i32) {
    %c0_i32 = arith.constant 0 : i32
    %c0_i32_0 = arith.constant 0 : i32
    %c0_i32_1 = arith.constant 0 : i32
    return %c0_i32, %c0_i32_0 : i32, i32
  }
  func.func @transform_2(%arg0: i32) -> i32 {
    %c0_i32 = arith.constant 0 : i32
    %c0_i32_0 = arith.constant 0 : i32
    return %c0_i32 : i32
  }
  func.func @transform_3(%arg0: i32) -> (i32, i32) {
    %c0_i32 = arith.constant 0 : i32
    %c0_i32_0 = arith.constant 0 : i32
    return %arg0, %c0_i32 : i32, i32
  }
}

</mosaic_0001>

<llo_original>
// kernel: tpu_custom_call.1
$region0: #{tpu_custom_call.1}
  #allocation0 [shape = 'u32[]', space=smem, size = 0x4, offset = 0x4, fixed_abs, tag = 'smem constant byte address 0x4 - core index']
  #allocation1 [shape = 'u32[144,128]{1,0:T(1,128)}', space=vmem, size = 0x12000, scoped, tag = 'internal scratch']
  #allocation2 [shape = 'f32[1]{0:T(128)S(6)}', space=smem, size = 0x200, scoped, tag = 'scoped memory for tpu_custom_call.1']
  %s0 = inlined_call_operand.hbm [shape: f32[256,128], index: 0, kind: input, shape index: {}]
  %s1 = inlined_call_operand.vmem [shape: f32[128,1], index: 1, kind: input, shape index: {}]
  %s2 = inlined_call_operand.<no memory space> [shape: f32[1], index: 2, kind: input, shape index: {}]
  %s3 = inlined_call_operand.vmem [shape: f32[256,1], index: 3, kind: output, shape index: {}]
  %s4 = sld [smem:[#allocation0]]
  $region49: #{tpu_custom_call.1} parent=0
    _
  %s6 = ssub.s32 1, %s4
  %s7 = scalar_select 0, %s6, %s4
  %8 = sst [smem:[#allocation2]] %s2
  $region1: #{tpu_custom_call.1} parent=0
    #allocation3 [shape = 'u8[65536]{0}', space=vmem, size = 0x10000, scoped, tag = 'input window, operand 0']
    #allocation4 [shape = 's32[2]{0}', space=sflag, size = 0x8, scoped, tag = 'scoped memory for tpu_custom_call.1']
    %9 = vsyncpa [#allocation4], 0
    %s10 = scalar_lea.sflag [#allocation4], 1
    %11 = vsyncpa %s10, 0
    loop: start=0, step=1, limit=6
    $region2: #{tpu_custom_call.1} parent=1 // loop_pre_header
      _
    $region3: #{tpu_custom_call.1} parent=1 // loop_header
      %s13 = sphi 0, %s17
      %p14 = scmp.ge.s32.totalorder %s13, 6
      %s23 = sphi 0, %s25
      %s26 = sphi 0, %s23
      %s27 = sphi 0, %s26
      %s43 = sphi 0, %s27
      %s47 = sphi 0, %s47
      %s49 = sphi 0, %s47
      %s50 = sphi 0, %s49
      %s64 = sphi 0, %s50
      %s68 = sphi 0, %s68
      %s70 = sphi 0, %s68
      %s71 = sphi 0, %s70
      %s85 = sphi 0, %s71
      %s91 = sphi 0, %s93
      %s94 = sphi 0, %s91
      %s95 = sphi 0, %s94
      %s111 = sphi 0, %s95
    $region4: #{tpu_custom_call.1} parent=1 // loop_header_branch
      %16 = sbr.rel (%p14) target = $region8
    $region5: #{tpu_custom_call.1} parent=1 // loop_body
      %s18 = ssub.s32 %s13, 1
      %s19 = ssub.s32 %s13, 2
      %s20 = sadd.s32 %s13, 1
      %s21 = ssub.s32 %s13, %s20
      %p22 = scmp.eq.s32.totalorder %s21, 0
      %s24 = sadd.s32 %s23, 1
      %s25 = scalar_select %p22, %s23, %s24
      %p28 = pneg %p22
      %p29 = scmp.eq.s32.totalorder %s13, 3
      %p30 = por %p28, %p29
      %p31 = scmp.ne.s32.totalorder %s23, %s26
      %p32 = scmp.eq.s32.totalorder %s13, 0
      %p33 = por %p31, %p32
      %p34 = scmp.ne.s32.totalorder %s23, %s26
      %p35 = scmp.eq.s32.totalorder %s18, 3
      %p36 = por %p34, %p35
      %p37 = scmp.ne.s32.totalorder %s26, %s27
      %p38 = scmp.eq.s32.totalorder %s18, 0
      %p39 = por %p37, %p38
      %p40 = scmp.ne.s32.totalorder %s26, %s27
      %p41 = scmp.eq.s32.totalorder %s19, 3
      %p42 = por %p40, %p41
      %p44 = scmp.ne.s32.totalorder %s27, %s43
      %p45 = scmp.eq.s32.totalorder %s19, 0
      %p46 = por %p44, %p45
      %s48 = sadd.s32 %s47, 1
      %p51 = scmp.eq.s32.totalorder %s13, 3
      %p52 = scmp.ne.s32.totalorder %s47, %s49
      %p53 = scmp.eq.s32.totalorder %s13, 0
      %p54 = por %p52, %p53
      %p55 = scmp.ne.s32.totalorder %s47, %s49
      %p56 = scmp.eq.s32.totalorder %s18, 3
      %p57 = por %p55, %p56
      %p58 = scmp.ne.s32.totalorder %s49, %s50
      %p59 = scmp.eq.s32.totalorder %s18, 0
      %p60 = por %p58, %p59
      %p61 = scmp.ne.s32.totalorder %s49, %s50
      %p62 = scmp.eq.s32.totalorder %s19, 3
      %p63 = por %p61, %p62
      %p65 = scmp.ne.s32.totalorder %s50, %s64
      %p66 = scmp.eq.s32.totalorder %s19, 0
      %p67 = por %p65, %p66
      %s69 = sadd.s32 %s68, 1
      %p72 = scmp.eq.s32.totalorder %s13, 3
      %p73 = scmp.ne.s32.totalorder %s68, %s70
      %p74 = scmp.eq.s32.totalorder %s13, 0
      %p75 = por %p73, %p74
      %p76 = scmp.ne.s32.totalorder %s68, %s70
      %p77 = scmp.eq.s32.totalorder %s18, 3
      %p78 = por %p76, %p77
      %p79 = scmp.ne.s32.totalorder %s70, %s71
      %p80 = scmp.eq.s32.totalorder %s18, 0
      %p81 = por %p79, %p80
      %p82 = scmp.ne.s32.totalorder %s70, %s71
      %p83 = scmp.eq.s32.totalorder %s19, 3
      %p84 = por %p82, %p83
      %p86 = scmp.ne.s32.totalorder %s71, %s85
      %p87 = scmp.eq.s32.totalorder %s19, 0
      %p88 = por %p86, %p87
      %s89 = ssub.s32 %s13, %s20
      %p90 = scmp.eq.s32.totalorder %s89, 0
      %s92 = sadd.s32 %s91, 1
      %s93 = scalar_select %p90, %s91, %s92
      %p96 = pneg %p90
      %p97 = scmp.eq.s32.totalorder %s13, 3
      %p98 = por %p96, %p97
      %p99 = scmp.ne.s32.totalorder %s91, %s94
      %p100 = scmp.eq.s32.totalorder %s13, 0
      %p101 = por %p99, %p100
      %p102 = scmp.ne.s32.totalorder %s91, %s94
      %p103 = scmp.eq.s32.totalorder %s18, 3
      %p104 = por %p102, %p103
      %p105 = scmp.ne.s32.totalorder %s94, %s95
      %p106 = scmp.eq.s32.totalorder %s18, 0
      %p107 = por %p105, %p106
      %p108 = scmp.ne.s32.totalorder %s94, %s95
      %p109 = scmp.eq.s32.totalorder %s19, 3
      %p110 = por %p108, %p109
      %p112 = scmp.ne.s32.totalorder %s95, %s111
      %p113 = scmp.eq.s32.totalorder %s19, 0
      %p114 = por %p112, %p113
      %p115 = scmp.le.s32.totalorder 1, %s13
      %p116 = scmp.lt.s32.totalorder %s13, 5
      %p117 = pnand %p115, %p116
      %p118 = pneg %p117
      // Predicated region
      $region9: #{tpu_custom_call.1} parent=5 // pred_check
        _
      $region10: #{tpu_custom_call.1} parent=5 // pred_check_branch
        %120 = sbr.rel (%p117) target = $region12
      $region11: #{tpu_custom_call.1} parent=5 // pred_region
        %s121 = ssub.s32 %s13, 1
        // Predicated region
        $region13: #{tpu_custom_call.1} parent=11 // pred_check
          %p122 = pneg %p60
        $region14: #{tpu_custom_call.1} parent=11 // pred_check_branch
          %124 = sbr.rel (%p122) target = $region16
        $region15: #{tpu_custom_call.1} parent=11 // pred_region
          _
        $region16: #{tpu_custom_call.1} parent=11 // pred_fallthru
          _
        // Predicated region
        $region17: #{tpu_custom_call.1} parent=11 // pred_check
          %p125 = pneg %p81
        $region18: #{tpu_custom_call.1} parent=11 // pred_check_branch
          %127 = sbr.rel (%p125) target = $region20
        $region19: #{tpu_custom_call.1} parent=11 // pred_region
          _
        $region20: #{tpu_custom_call.1} parent=11 // pred_fallthru
          _
      $region12: #{tpu_custom_call.1} parent=5 // pred_fallthru
        _
      %p128 = scmp.lt.s32.totalorder %s13, 4
      // Predicated region
      $region21: #{tpu_custom_call.1} parent=5 // pred_check
        %p129 = pneg %p128
      $region22: #{tpu_custom_call.1} parent=5 // pred_check_branch
        %131 = sbr.rel (%p129) target = $region24
      $region23: #{tpu_custom_call.1} parent=5 // pred_region
        // Predicated region
        $region25: #{tpu_custom_call.1} parent=23 // pred_check
          %p132 = pneg %p33
        $region26: #{tpu_custom_call.1} parent=23 // pred_check_branch
          %134 = sbr.rel (%p132) target = $region28
        $region27: #{tpu_custom_call.1} parent=23 // pred_region
          %s135 = sand.u32 %s23, 1
          %s136 = scalar_lea.sflag [#allocation4], %s135
          %s137 = sand.u32 %s23, 1
          %s138 = smul.addr %s137, 64
          %s139 = scalar_lea.vmem [#allocation3], %s138
          %s140 = smul.u32 8, %s13
          %s142 = ssub.s32 1024, 1024
          %143 = vsyncadd %s136, %s142
          %s144 = smul.addr %s140, 128
          %s145 = scalar_lea.hbm %s0, %s144
          %s146 = sshll.u32 %s139, 4
          %s147 = int_to_ptr.vmem [resolvable:$true] %s146
          %152 = dma.hbm_to_vmem [thread:$0]  %s145, 1024, %s147, %s136, 128, 128, 8
        $region28: #{tpu_custom_call.1} parent=23 // pred_fallthru
          _
      $region24: #{tpu_custom_call.1} parent=5 // pred_fallthru
        _
      %p153 = scmp.le.s32.totalorder 1, %s13
      %p154 = scmp.lt.s32.totalorder %s13, 5
      %p155 = pnand %p153, %p154
      %p156 = pneg %p155
      // Predicated region
      $region29: #{tpu_custom_call.1} parent=5 // pred_check
        _
      $region30: #{tpu_custom_call.1} parent=5 // pred_check_branch
        %158 = sbr.rel (%p155) target = $region32
      $region31: #{tpu_custom_call.1} parent=5 // pred_region
        %s159 = ssub.s32 %s13, 1
        %s160 = sand.u32 %s26, 1
        %s161 = scalar_lea.sflag [#allocation4], %s160
        %s162 = sand.u32 %s26, 1
        %s163 = smul.addr %s162, 64
        %s164 = scalar_lea.vmem [#allocation3], %s163
        // Predicated region
        $region33: #{tpu_custom_call.1} parent=31 // pred_check
          %p165 = pneg %p39
        $region34: #{tpu_custom_call.1} parent=31 // pred_check_branch
          %167 = sbr.rel (%p165) target = $region36
        $region35: #{tpu_custom_call.1} parent=31 // pred_region
          %168 = dma.done %s161, 1024
        $region36: #{tpu_custom_call.1} parent=31 // pred_fallthru
          _
        %s169 = sand.u32 %s26, 1
        %s170 = scalar_lea.sflag [#allocation4], %s169
        %s171 = sand.u32 %s26, 1
        %s172 = smul.addr %s171, 64
        %s173 = scalar_lea.vmem [#allocation3], %s172
        %p174 = pneg %p39
        %p175 = pneg %p36
        %p176 = pneg %p60
        %p177 = pneg %p57
        %p178 = pneg %p81
        %p179 = pneg %p78
        %p180 = pneg %p107
        %p181 = pneg %p104
        %s182 = smul.u32 8, %s18
        %p183 = scmp.lt.s32.totalorder %s182, 31
        %s184 = scalar_select %p183, %s182, 31
        %s185 = smul.addr %s184, 8
        %s186 = scalar_lea.vmem %s3, %s185
        %s187 = smul.u32 8, %s18
        %s188 = smul.u32 8, %s18
        %p189 = scmp.lt.s32.totalorder %s188, 31
        %s190 = scalar_select %p189, %s188, 31
        %s191 = smul.addr %s190, 8
        %s192 = scalar_lea.vmem %s3, %s191
        %s193 = smul.u32 8, %s18
        %v194 = vld [vmem:[%s164] sm:$0xff]
        %v195 = vld [vmem:[%s164 + $0x8] sm:$0xff]
        %v196 = vld [vmem:[%s164 + $0x10] sm:$0xff]
        %v197 = vld [vmem:[%s164 + $0x18] sm:$0xff]
        %v198 = vld [vmem:[%s164 + $0x20] sm:$0xff]
        %v199 = vld [vmem:[%s164 + $0x28] sm:$0xff]
        %v200 = vld [vmem:[%s164 + $0x30] sm:$0xff]
        %v201 = vld [vmem:[%s164 + $0x38] sm:$0xff]
        %v202 = vld [vmem:[%s1] sm:$0xff]
        %v203 = vld [vmem:[%s1 + $0x8] sm:$0xff]
        %v204 = vld [vmem:[%s1 + $0x10] sm:$0xff]
        %v205 = vld [vmem:[%s1 + $0x18] sm:$0xff]
        %v206 = vld [vmem:[%s1 + $0x20] sm:$0xff]
        %v207 = vld [vmem:[%s1 + $0x28] sm:$0xff]
        %v208 = vld [vmem:[%s1 + $0x30] sm:$0xff]
        %v209 = vld [vmem:[%s1 + $0x38] sm:$0xff]
        %v210 = vld [vmem:[%s1 + $0x40] sm:$0xff]
        %v211 = vld [vmem:[%s1 + $0x48] sm:$0xff]
        %v212 = vld [vmem:[%s1 + $0x50] sm:$0xff]
        %v213 = vld [vmem:[%s1 + $0x58] sm:$0xff]
        %v214 = vld [vmem:[%s1 + $0x60] sm:$0xff]
        %v215 = vld [vmem:[%s1 + $0x68] sm:$0xff]
        %v216 = vld [vmem:[%s1 + $0x70] sm:$0xff]
        %v217 = vld [vmem:[%s1 + $0x78] sm:$0xff]
        %s218 = sld [smem:[#allocation2]]
        %v219 = vstv %s218
        %220 = vmatprep.subr.mxu0 0.0
        %221 = vmatpush1.msra.mxu0 %v202
        %222 = vmatprep.subr.mxu0 0.0
        %223 = vmatpush1.msra.mxu0 %v203
        %224 = vmatprep.subr.mxu0 0.0
        %225 = vmatpush1.msra.mxu0 %v204
        %226 = vmatprep.subr.mxu0 0.0
        %227 = vmatpush1.msra.mxu0 %v205
        %228 = vmatprep.subr.mxu0 0.0
        %229 = vmatpush1.msra.mxu0 %v206
        %230 = vmatprep.subr.mxu0 0.0
        %231 = vmatpush1.msra.mxu0 %v207
        %232 = vmatprep.subr.mxu0 0.0
        %233 = vmatpush1.msra.mxu0 %v208
        %234 = vmatprep.subr.mxu0 0.0
        %235 = vmatpush1.msra.mxu0 %v209
        %236 = vmatprep.subr.mxu0 0.0
        %237 = vmatpush1.msra.mxu0 %v210
        %238 = vmatprep.subr.mxu0 0.0
        %239 = vmatpush1.msra.mxu0 %v211
        %240 = vmatprep.subr.mxu0 0.0
        %241 = vmatpush1.msra.mxu0 %v212
        %242 = vmatprep.subr.mxu0 0.0
        %243 = vmatpush1.msra.mxu0 %v213
        %244 = vmatprep.subr.mxu0 0.0
        %245 = vmatpush1.msra.mxu0 %v214
        %246 = vmatprep.subr.mxu0 0.0
        %247 = vmatpush1.msra.mxu0 %v215
        %248 = vmatprep.subr.mxu0 0.0
        %249 = vmatpush1.msra.mxu0 %v216
        %250 = vmatprep.subr.mxu0 0.0
        %251 = vmatpush1.msra.mxu0 %v217
        %252 = vmatprep.subr.mxu0 0.0
        %253 = vmatpush1.msra.mxu0 0.0
        %254 = vmatprep.subr.mxu0 0.0
        %255 = vmatpush1.msra.mxu0 0.0
        %256 = vmatprep.subr.mxu0 0.0
        %257 = vmatpush1.msra.mxu0 0.0
        %258 = vmatprep.subr.mxu0 0.0
        %259 = vmatpush1.msra.mxu0 0.0
        %260 = vmatprep.subr.mxu0 0.0
        %261 = vmatpush1.msra.mxu0 0.0
        %262 = vmatprep.subr.mxu0 0.0
        %263 = vmatpush1.msra.mxu0 0.0
        %264 = vmatprep.subr.mxu0 0.0
        %265 = vmatpush1.msra.mxu0 0.0
        %266 = vmatprep.subr.mxu0 0.0
        %267 = vmatpush1.msra.mxu0 0.0
        %268 = vmatprep.subr.mxu0 0.0
        %269 = vmatpush1.msra.mxu0 0.0
        %270 = vmatprep.subr.mxu0 0.0
        %271 = vmatpush1.msra.mxu0 0.0
        %272 = vmatprep.subr.mxu0 0.0
        %273 = vmatpush1.msra.mxu0 0.0
        %274 = vmatprep.subr.mxu0 0.0
        %275 = vmatpush1.msra.mxu0 0.0
        %276 = vmatprep.subr.mxu0 0.0
        %277 = vmatpush1.msra.mxu0 0.0
        %278 = vmatprep.subr.mxu0 0.0
        %279 = vmatpush1.msra.mxu0 0.0
        %280 = vmatprep.subr.mxu0 0.0
        %281 = vmatpush1.msra.mxu0 0.0
        %282 = vmatprep.subr.mxu0 0.0
        %283 = vmatpush1.msra.mxu0 0.0
        %284 = vmatprep.mubr.f32.mxu0 0.0
        %285 = vmatmul.mubr.f32.gmra.mrb[0].mxu0 %v194
        %v286 = vpop.f32.mrb[0].mxu0
        %v287 = vadd.f32 %v219, %v286
        %v288 = vpop.f32.mrb[0].mxu0
        %289 = vmatprep.mubr.f32.mxu0 0.0
        %290 = vmatmul.mubr.f32.gmra.mrb[0].mxu0 %v195
        %v291 = vpop.f32.mrb[0].mxu0
        %v292 = vadd.f32 %v219, %v291
        %v293 = vpop.f32.mrb[0].mxu0
        %294 = vmatprep.mubr.f32.mxu0 0.0
        %295 = vmatmul.mubr.f32.gmra.mrb[0].mxu0 %v196
        %v296 = vpop.f32.mrb[0].mxu0
        %v297 = vadd.f32 %v219, %v296
        %v298 = vpop.f32.mrb[0].mxu0
        %299 = vmatprep.mubr.f32.mxu0 0.0
        %300 = vmatmul.mubr.f32.gmra.mrb[0].mxu0 %v197
        %v301 = vpop.f32.mrb[0].mxu0
        %v302 = vadd.f32 %v219, %v301
        %v303 = vpop.f32.mrb[0].mxu0
        %304 = vmatprep.mubr.f32.mxu0 0.0
        %305 = vmatmul.mubr.f32.gmra.mrb[0].mxu0 %v198
        %v306 = vpop.f32.mrb[0].mxu0
        %v307 = vadd.f32 %v219, %v306
        %v308 = vpop.f32.mrb[0].mxu0
        %309 = vmatprep.mubr.f32.mxu0 0.0
        %310 = vmatmul.mubr.f32.gmra.mrb[0].mxu0 %v199
        %v311 = vpop.f32.mrb[0].mxu0
        %v312 = vadd.f32 %v219, %v311
        %v313 = vpop.f32.mrb[0].mxu0
        %314 = vmatprep.mubr.f32.mxu0 0.0
        %315 = vmatmul.mubr.f32.gmra.mrb[0].mxu0 %v200
        %v316 = vpop.f32.mrb[0].mxu0
        %v317 = vadd.f32 %v219, %v316
        %v318 = vpop.f32.mrb[0].mxu0
        %319 = vmatprep.mubr.f32.mxu0 0.0
        %320 = vmatmul.mubr.f32.gmra.mrb[0].mxu0 %v201
        %v321 = vpop.f32.mrb[0].mxu0
        %v322 = vadd.f32 %v219, %v321
        %v323 = vpop.f32.mrb[0].mxu0
        %324 = vdwg.mxu0
        %vm325 = vcmask 7168
        %326 = vst.msk [vmem:[%s192] sm:$0xff] %vm325, %v287
        %327 = vst.msk [vmem:[%s192 + $0x8] sm:$0xff] %vm325, %v292
        %328 = vst.msk [vmem:[%s192 + $0x10] sm:$0xff] %vm325, %v297
        %329 = vst.msk [vmem:[%s192 + $0x18] sm:$0xff] %vm325, %v302
        %330 = vst.msk [vmem:[%s192 + $0x20] sm:$0xff] %vm325, %v307
        %331 = vst.msk [vmem:[%s192 + $0x28] sm:$0xff] %vm325, %v312
        %332 = vst.msk [vmem:[%s192 + $0x30] sm:$0xff] %vm325, %v317
        %333 = vst.msk [vmem:[%s192 + $0x38] sm:$0xff] %vm325, %v322
        %s334 = smul.u32 8, %s18
        %p335 = scmp.lt.s32.totalorder %s334, 31
        %s336 = scalar_select %p335, %s334, 31
        %s337 = smul.addr %s336, 8
        %s338 = scalar_lea.vmem %s3, %s337
        // Predicated region
        $region37: #{tpu_custom_call.1} parent=31 // pred_check
          %p339 = pneg %p104
        $region38: #{tpu_custom_call.1} parent=31 // pred_check_branch
          %341 = sbr.rel (%p339) target = $region40
        $region39: #{tpu_custom_call.1} parent=31 // pred_region
          %s342 = smul.u32 8, %s18
        $region40: #{tpu_custom_call.1} parent=31 // pred_fallthru
          _
      $region32: #{tpu_custom_call.1} parent=5 // pred_fallthru
        _
      %p343 = scmp.le.s32.totalorder 2, %s13
      // Predicated region
      $region41: #{tpu_custom_call.1} parent=5 // pred_check
        %p344 = pneg %p343
      $region42: #{tpu_custom_call.1} parent=5 // pred_check_branch
        %346 = sbr.rel (%p344) target = $region44
      $region43: #{tpu_custom_call.1} parent=5 // pred_region
        %s347 = ssub.s32 %s13, 2
        // Predicated region
        $region45: #{tpu_custom_call.1} parent=43 // pred_check
          %p348 = pneg %p110
        $region46: #{tpu_custom_call.1} parent=43 // pred_check_branch
          %350 = sbr.rel (%p348) target = $region48
        $region47: #{tpu_custom_call.1} parent=43 // pred_region
          %s351 = smul.u32 8, %s19
          %p352 = scmp.lt.s32.totalorder %s351, 31
          %s353 = scalar_select %p352, %s351, 31
          %s354 = smul.addr %s353, 8
          %s355 = scalar_lea.vmem %s3, %s354
        $region48: #{tpu_custom_call.1} parent=43 // pred_fallthru
          _
      $region44: #{tpu_custom_call.1} parent=5 // pred_fallthru
        _
    $region6: #{tpu_custom_call.1} parent=1 // loop_footer
      %s17 = sadd.s32 1, %s13
    $region7: #{tpu_custom_call.1} parent=1 // loop_footer_branch
      %12 = sbr.rel target = $region3
    $region8: #{tpu_custom_call.1} parent=1 // loop_exit
      _
    %356 = vsyncpa [#allocation4], 1
    %s357 = scalar_lea.sflag [#allocation4], 1
    %358 = vsyncpa %s357, 1

</llo_original>
